<compile_context>
chip_gen: v7x
topology: tpu7x:2x2x1
jax: 0.10.0
libtpu: 0.0.40
codegen_flags: <defaults>
</compile_context>

<pallas_src>
import functools

import jax
import jax.numpy as jnp
from jax.experimental import pallas as pl
from jax.experimental.pallas import tpu as pltpu

_PACK = 8  # rows folded into one lane-dense packed row (M=16 -> 128 lanes)


def _mlp_kernel(x_ref, w1_ref, b1_ref, w2_ref, b2_ref, w3_ref, b3_ref, o_ref):
    cdt = w1_ref.dtype  # compute/streaming dtype for MXU inputs (bf16 or f32)
    # x streams in its native dtype (f32); cast to the MXU dtype in-kernel so the
    # wrapper never runs a separate HBM cast pass. The VPU cast hides under DMA/MXU.
    x = x_ref[...].astype(cdt)
    h1 = jnp.dot(x, w1_ref[...], preferred_element_type=jnp.float32) + b1_ref[...]
    h1 = jnp.maximum(h1, 0.0).astype(cdt)
    h2 = jnp.dot(h1, w2_ref[...], preferred_element_type=jnp.float32) + b2_ref[...]
    h2 = jnp.maximum(h2, 0.0).astype(cdt)
    out = jnp.dot(h2, w3_ref[...], preferred_element_type=jnp.float32) + b3_ref[...]
    o_ref[...] = out.astype(o_ref.dtype)


def _round_up(n, m):
    return ((n + m - 1) // m) * m


def _block_diag(w, p):
    # p copies of w on the diagonal: (fin, fout) -> (p*fin, p*fout)
    return jnp.kron(jnp.eye(p, dtype=w.dtype), w)


@functools.partial(jax.jit, static_argnames=("block_batch", "compute_dtype"))
def offset_predictor_forward(x, params, *, block_batch=8192, compute_dtype=jnp.bfloat16):
    """Pallas forward pass of OffsetPredictor.

    x: (B, num_models) float array (streamed in its own dtype; cast in-kernel).
    params: dict with w1 (M,64), b1 (1,64), w2 (64,32), b2 (1,32), w3 (32,M), b3 (1,M)
            stored as (in_features, out_features), i.e. transpose of nn.Linear.weight.
    block_batch: batch rows per grid step (sweepable). Default 8192 keeps VMEM use
                 ~8 MiB; if swept much higher, pass vmem_limit_bytes explicitly.
    compute_dtype: MXU streaming dtype for weights / activations (bf16 default;
                   jnp.float32 for full-f32 behaviour). Output is always f32.
    """
    P = _PACK
    B, M = x.shape

    # Block-diagonal weights so the whole MLP stays in the lane-dense packed layout.
    w1 = _block_diag(params["w1"], P).astype(compute_dtype)   # (P*M,  P*64)
    w2 = _block_diag(params["w2"], P).astype(compute_dtype)   # (P*64, P*32)
    w3 = _block_diag(params["w3"], P).astype(compute_dtype)   # (P*32, P*M)
    b1 = jnp.tile(params["b1"].astype(jnp.float32), (1, P))   # (1, P*64)
    b2 = jnp.tile(params["b2"].astype(jnp.float32), (1, P))   # (1, P*32)
    b3 = jnp.tile(params["b3"].astype(jnp.float32), (1, P))   # (1, P*M)

    # Lane-dense packing of x: (B, M) -> (R, P*M). Row-major dim-merge => free reshape.
    # Zero-pad only when B is not a multiple of P.
    R = pl.cdiv(B, P)
    if B != R * P:
        x = jnp.pad(x, ((0, R * P - B), (0, 0)))
    xp = x.reshape(R, P * M)

    # Batch-tile selection, in packed rows. Keep tiles (8,128)-aligned, big enough to
    # amortize per-step overhead, but with >= 4 grid steps for large batches so v7x
    # gets >= 2 pipeline steps per TensorCore and DMA prologue/epilogue stays hidden.
    target = max(8, block_batch // P)
    if R <= 32:
        blk = R  # single step; block equals full dim, no 8-alignment needed
    else:
        cap = max(8, (pl.cdiv(R, 4) // 8) * 8)
        blk = min(_round_up(target, 8), cap)
    grid = (pl.cdiv(R, blk),)

    full = lambda shape: pl.BlockSpec(shape, lambda i: (0, 0))

    outp = pl.pallas_call(
        _mlp_kernel,
        out_shape=jax.ShapeDtypeStruct((R, P * M), jnp.float32),
        grid=grid,
        in_specs=[
            pl.BlockSpec((blk, P * M), lambda i: (i, 0)),  # packed x tile (streamed)
            full(w1.shape), full(b1.shape),                # fc1 (block-diag, VMEM-resident)
            full(w2.shape), full(b2.shape),                # fc2
            full(w3.shape), full(b3.shape),                # fc3
        ],
        out_specs=pl.BlockSpec((blk, P * M), lambda i: (i, 0)),
        compiler_params=pltpu.CompilerParams(
            dimension_semantics=("parallel",)),
    )(xp, w1, b1, w2, b2, w3, b3)

    out = outp.reshape(R * P, M)
    return out[:B] if B != R * P else out


def init_params(key, num_models):
    """Deterministic init mirroring nn.Linear's default U(-1/sqrt(fan_in), 1/sqrt(fan_in))."""
    def linear(key, fan_in, fan_out):
        kw, kb = jax.random.split(key)
        bound = 1.0 / jnp.sqrt(jnp.float32(fan_in))
        w = jax.random.uniform(kw, (fan_in, fan_out), jnp.float32, -bound, bound)
        b = jax.random.uniform(kb, (1, fan_out), jnp.float32, -bound, bound)
        return w, b

    k1, k2, k3 = jax.random.split(key, 3)
    w1, b1 = linear(k1, num_models, 64)
    w2, b2 = linear(k2, 64, 32)
    w3, b3 = linear(k3, 32, num_models)
    return {"w1": w1, "b1": b1, "w2": w2, "b2": b2, "w3": w3, "b3": b3}


def reference_forward(x, p):
    h1 = jnp.maximum(x @ p["w1"] + p["b1"], 0.0)
    h2 = jnp.maximum(h1 @ p["w2"] + p["b2"], 0.0)
    return h2 @ p["w3"] + p["b3"]


if __name__ == "__main__":
    num_models = 16

    key = jax.random.PRNGKey(0)
    k_params, k_x1, k_x2 = jax.random.split(key, 3)
    params = init_params(k_params, num_models)

    # Case 1: small batch, not a multiple of 8 -> exercises pad + single grid step.
    x_small = jax.random.normal(k_x1, (200, num_models), jnp.float32)
    # Case 2: larger batch, not a multiple of 8 -> exercises multi-step grid + ragged tile.
    x_big = jax.random.normal(k_x2, (520, num_models), jnp.float32)

    ref_small = reference_forward(x_small, params)
    ref_big = reference_forward(x_big, params)

    # f32 compute path: tight-ish check (tolerance covers TPU default-precision matmul).
    out_f32_small = jax.block_until_ready(
        offset_predictor_forward(x_small, params, compute_dtype=jnp.float32))
    out_f32_big = jax.block_until_ready(
        offset_predictor_forward(x_big, params, compute_dtype=jnp.float32))
    assert out_f32_small.shape == (200, num_models)
    assert out_f32_big.shape == (520, num_models)
    assert jnp.allclose(out_f32_small, ref_small, atol=2e-3, rtol=2e-3), "f32 mismatch (small)"
    assert jnp.allclose(out_f32_big, ref_big, atol=2e-3, rtol=2e-3), "f32 mismatch (big)"

    # Default bf16-streaming path: loose check (bf16 rounding of x/weights/activations).
    out_bf16 = jax.block_until_ready(offset_predictor_forward(x_big, params))
    assert out_bf16.shape == (520, num_models)
    assert out_bf16.dtype == jnp.float32
    assert jnp.allclose(out_bf16, ref_big, atol=5e-2, rtol=5e-2), "bf16 mismatch vs reference"

    print("KERNEL_OK")
</pallas_src>

<mosaic_0001>
module attributes {stable_mosaic.version = 11 : i64} {
  func.func @_mlp_kernel(%arg0: i32, %arg1: memref<25x128xf32, #tpu.memory_space<vmem>>, %arg2: memref<128x512xf32, #tpu.memory_space<vmem>>, %arg3: memref<1x512xf32, #tpu.memory_space<vmem>>, %arg4: memref<512x256xf32, #tpu.memory_space<vmem>>, %arg5: memref<1x256xf32, #tpu.memory_space<vmem>>, %arg6: memref<256x128xf32, #tpu.memory_space<vmem>>, %arg7: memref<1x128xf32, #tpu.memory_space<vmem>>, %arg8: memref<25x128xf32, #tpu.memory_space<vmem>>) attributes {dimension_semantics = [#tpu.dimension_semantics<parallel>], iteration_bounds = array<i64: 1>, scalar_prefetch = 0 : i64, scratch_operands = 0 : i64, tpu.core_type = #tpu.core_type<tc>, window_params = [{transform_indices = @transform_0, window_bounds = array<i64: 25, 128>}, {pipeline_mode = #tpu.pipeline_mode<synchronous>, transform_indices = @transform_1, window_bounds = array<i64: 128, 512>}, {pipeline_mode = #tpu.pipeline_mode<synchronous>, transform_indices = @transform_2, window_bounds = array<i64: 1, 512>}, {pipeline_mode = #tpu.pipeline_mode<synchronous>, transform_indices = @transform_3, window_bounds = array<i64: 512, 256>}, {pipeline_mode = #tpu.pipeline_mode<synchronous>, transform_indices = @transform_4, window_bounds = array<i64: 1, 256>}, {pipeline_mode = #tpu.pipeline_mode<synchronous>, transform_indices = @transform_5, window_bounds = array<i64: 256, 128>}, {pipeline_mode = #tpu.pipeline_mode<synchronous>, transform_indices = @transform_6, window_bounds = array<i64: 1, 128>}, {transform_indices = @transform_7, window_bounds = array<i64: 25, 128>}]} {
    %c0 = arith.constant 0 : index
    %c0_0 = arith.constant 0 : index
    %0 = vector.load %arg1[%c0, %c0_0] : memref<25x128xf32, #tpu.memory_space<vmem>>, vector<25x128xf32>
    %c0_1 = arith.constant 0 : index
    %c0_2 = arith.constant 0 : index
    %1 = vector.load %arg2[%c0_1, %c0_2] : memref<128x512xf32, #tpu.memory_space<vmem>>, vector<128x512xf32>
    %cst = arith.constant dense<0.000000e+00> : vector<25x512xf32>
    %2 = tpu.matmul %0, %1, %cst {dimension_numbers = #tpu.dot_dimension_numbers<[1], [0], [0], [1], [0, 0, 1, 1], [], []>} : vector<25x128xf32>, vector<128x512xf32>, vector<25x512xf32> -> vector<25x512xf32>
    %c0_3 = arith.constant 0 : index
    %c0_4 = arith.constant 0 : index
    %3 = vector.load %arg3[%c0_3, %c0_4] : memref<1x512xf32, #tpu.memory_space<vmem>>, vector<1x512xf32>
    %4 = vector.broadcast %3 : vector<1x512xf32> to vector<25x512xf32>
    %5 = arith.addf %2, %4 : vector<25x512xf32>
    %cst_5 = arith.constant 0.000000e+00 : f32
    %6 = vector.broadcast %cst_5 : f32 to vector<25x512xf32>
    %7 = arith.maximumf %5, %6 : vector<25x512xf32>
    %c0_6 = arith.constant 0 : index
    %c0_7 = arith.constant 0 : index
    %8 = vector.load %arg4[%c0_6, %c0_7] : memref<512x256xf32, #tpu.memory_space<vmem>>, vector<512x256xf32>
    %cst_8 = arith.constant dense<0.000000e+00> : vector<25x256xf32>
    %9 = tpu.matmul %7, %8, %cst_8 {dimension_numbers = #tpu.dot_dimension_numbers<[1], [0], [0], [1], [0, 0, 1, 1], [], []>} : vector<25x512xf32>, vector<512x256xf32>, vector<25x256xf32> -> vector<25x256xf32>
    %c0_9 = arith.constant 0 : index
    %c0_10 = arith.constant 0 : index
    %10 = vector.load %arg5[%c0_9, %c0_10] : memref<1x256xf32, #tpu.memory_space<vmem>>, vector<1x256xf32>
    %11 = vector.broadcast %10 : vector<1x256xf32> to vector<25x256xf32>
    %12 = arith.addf %9, %11 : vector<25x256xf32>
    %cst_11 = arith.constant 0.000000e+00 : f32
    %13 = vector.broadcast %cst_11 : f32 to vector<25x256xf32>
    %14 = arith.maximumf %12, %13 : vector<25x256xf32>
    %c0_12 = arith.constant 0 : index
    %c0_13 = arith.constant 0 : index
    %15 = vector.load %arg6[%c0_12, %c0_13] : memref<256x128xf32, #tpu.memory_space<vmem>>, vector<256x128xf32>
    %cst_14 = arith.constant dense<0.000000e+00> : vector<25x128xf32>
    %16 = tpu.matmul %14, %15, %cst_14 {dimension_numbers = #tpu.dot_dimension_numbers<[1], [0], [0], [1], [0, 0, 1, 1], [], []>} : vector<25x256xf32>, vector<256x128xf32>, vector<25x128xf32> -> vector<25x128xf32>
    %c0_15 = arith.constant 0 : index
    %c0_16 = arith.constant 0 : index
    %17 = vector.load %arg7[%c0_15, %c0_16] : memref<1x128xf32, #tpu.memory_space<vmem>>, vector<1x128xf32>
    %18 = vector.broadcast %17 : vector<1x128xf32> to vector<25x128xf32>
    %19 = arith.addf %16, %18 : vector<25x128xf32>
    %c0_17 = arith.constant 0 : index
    %c0_18 = arith.constant 0 : index
    %20 = vector.load %arg8[%c0_17, %c0_18] : memref<25x128xf32, #tpu.memory_space<vmem>>, vector<25x128xf32>
    tpu.vector_store %arg8[%c0_17, %c0_18], %19 {strides = array<i32>} : memref<25x128xf32, #tpu.memory_space<vmem>>, vector<25x128xf32>,
    return
  }
  func.func @transform_0(%arg0: i32) -> (i32, i32) {
    %c0_i32 = arith.constant 0 : i32
    %c0_i32_0 = arith.constant 0 : i32
    return %arg0, %c0_i32 : i32, i32
  }
  func.func @transform_1(%arg0: i32) -> (i32, i32) {
    %c0_i32 = arith.constant 0 : i32
    %c0_i32_0 = arith.constant 0 : i32
    %c0_i32_1 = arith.constant 0 : i32
    return %c0_i32, %c0_i32_0 : i32, i32
  }
  func.func @transform_2(%arg0: i32) -> (i32, i32) {
    %c0_i32 = arith.constant 0 : i32
    %c0_i32_0 = arith.constant 0 : i32
    %c0_i32_1 = arith.constant 0 : i32
    return %c0_i32, %c0_i32_0 : i32, i32
  }
  func.func @transform_3(%arg0: i32) -> (i32, i32) {
    %c0_i32 = arith.constant 0 : i32
    %c0_i32_0 = arith.constant 0 : i32
    %c0_i32_1 = arith.constant 0 : i32
    return %c0_i32, %c0_i32_0 : i32, i32
  }
  func.func @transform_4(%arg0: i32) -> (i32, i32) {
    %c0_i32 = arith.constant 0 : i32
    %c0_i32_0 = arith.constant 0 : i32
    %c0_i32_1 = arith.constant 0 : i32
    return %c0_i32, %c0_i32_0 : i32, i32
  }
  func.func @transform_5(%arg0: i32) -> (i32, i32) {
    %c0_i32 = arith.constant 0 : i32
    %c0_i32_0 = arith.constant 0 : i32
    %c0_i32_1 = arith.constant 0 : i32
    return %c0_i32, %c0_i32_0 : i32, i32
  }
  func.func @transform_6(%arg0: i32) -> (i32, i32) {
    %c0_i32 = arith.constant 0 : i32
    %c0_i32_0 = arith.constant 0 : i32
    %c0_i32_1 = arith.constant 0 : i32
    return %c0_i32, %c0_i32_0 : i32, i32
  }
  func.func @transform_7(%arg0: i32) -> (i32, i32) {
    %c0_i32 = arith.constant 0 : i32
    %c0_i32_0 = arith.constant 0 : i32
    return %arg0, %c0_i32 : i32, i32
  }
}

</mosaic_0001>

<llo_original>
// kernel: offset_predictor_forward.1
$region0: #{offset_predictor_forward.1}
  #allocation0 [shape = 'u32[]', space=smem, size = 0x4, offset = 0x4, fixed_abs, tag = 'smem constant byte address 0x4 - core index']
  #allocation1 [shape = 'u32[144,128]{1,0:T(1,128)}', space=vmem, size = 0x12000, scoped, tag = 'internal scratch']
  %s0 = inlined_call_operand.vmem [shape: f32[25,128], index: 0, kind: input, shape index: {}]
  %s1 = inlined_call_operand.vmem [shape: f32[128,512], index: 1, kind: input, shape index: {}]
  %s2 = inlined_call_operand.vmem [shape: f32[1,512], index: 2, kind: input, shape index: {}]
  %s3 = inlined_call_operand.vmem [shape: f32[512,256], index: 3, kind: input, shape index: {}]
  %s4 = inlined_call_operand.vmem [shape: f32[1,256], index: 4, kind: input, shape index: {}]
  %s5 = inlined_call_operand.vmem [shape: f32[256,128], index: 5, kind: input, shape index: {}]
  %s6 = inlined_call_operand.vmem [shape: f32[1,128], index: 6, kind: input, shape index: {}]
  %s7 = inlined_call_operand.vmem [shape: f32[25,128], index: 7, kind: output, shape index: {}]
  %s8 = sld [smem:[#allocation0]]
  $region38: #{offset_predictor_forward.1} parent=0
    _
  %s10 = ssub.s32 1, %s8
  %s11 = scalar_select 0, %s10, %s8
  // Predicated region
  $region2: #{offset_predictor_forward.1} parent=0 // pred_check
    _
  $region3: #{offset_predictor_forward.1} parent=0 // pred_check_branch
    %13 = sbr.rel (0) target = $region5
  $region4: #{offset_predictor_forward.1} parent=0 // pred_region
    _
  $region5: #{offset_predictor_forward.1} parent=0 // pred_fallthru
    _
  // Predicated region
  $region6: #{offset_predictor_forward.1} parent=0 // pred_check
    _
  $region7: #{offset_predictor_forward.1} parent=0 // pred_check_branch
    %15 = sbr.rel (0) target = $region9
  $region8: #{offset_predictor_forward.1} parent=0 // pred_region
    _
  $region9: #{offset_predictor_forward.1} parent=0 // pred_fallthru
    _
  // Predicated region
  $region10: #{offset_predictor_forward.1} parent=0 // pred_check
    _
  $region11: #{offset_predictor_forward.1} parent=0 // pred_check_branch
    %17 = sbr.rel (0) target = $region13
  $region12: #{offset_predictor_forward.1} parent=0 // pred_region
    _
  $region13: #{offset_predictor_forward.1} parent=0 // pred_fallthru
    _
  // Predicated region
  $region14: #{offset_predictor_forward.1} parent=0 // pred_check
    _
  $region15: #{offset_predictor_forward.1} parent=0 // pred_check_branch
    %19 = sbr.rel (0) target = $region17
  $region16: #{offset_predictor_forward.1} parent=0 // pred_region
    _
  $region17: #{offset_predictor_forward.1} parent=0 // pred_fallthru
    _
  // Predicated region
  $region18: #{offset_predictor_forward.1} parent=0 // pred_check
    _
  $region19: #{offset_predictor_forward.1} parent=0 // pred_check_branch
    %21 = sbr.rel (0) target = $region21
  $region20: #{offset_predictor_forward.1} parent=0 // pred_region
    _
  $region21: #{offset_predictor_forward.1} parent=0 // pred_fallthru
    _
  // Predicated region
  $region22: #{offset_predictor_forward.1} parent=0 // pred_check
    _
  $region23: #{offset_predictor_forward.1} parent=0 // pred_check_branch
    %23 = sbr.rel (0) target = $region25
  $region24: #{offset_predictor_forward.1} parent=0 // pred_region
    _
  $region25: #{offset_predictor_forward.1} parent=0 // pred_fallthru
    _
  // Predicated region
  $region26: #{offset_predictor_forward.1} parent=0 // pred_check
    _
  $region27: #{offset_predictor_forward.1} parent=0 // pred_check_branch
    %25 = sbr.rel (0) target = $region29
  $region28: #{offset_predictor_forward.1} parent=0 // pred_region
    _
  $region29: #{offset_predictor_forward.1} parent=0 // pred_fallthru
    _
  %v26 = vld [vmem:[%s0] sm:$0xff]
  %v27 = vld [vmem:[%s0 + $0x8] sm:$0xff]
  %v28 = vld [vmem:[%s0 + $0x10] sm:$0xff]
  %v29 = vld [vmem:[%s0 + $0x18] sm:$0x1]
  %v30 = vld [vmem:[%s1] sm:$0xff]
  %v31 = vld [vmem:[%s1 + $0x8] sm:$0xff]
  %v32 = vld [vmem:[%s1 + $0x10] sm:$0xff]
  %v33 = vld [vmem:[%s1 + $0x18] sm:$0xff]
  %v34 = vld [vmem:[%s1 + $0x20] sm:$0xff]
  %v35 = vld [vmem:[%s1 + $0x28] sm:$0xff]
  %v36 = vld [vmem:[%s1 + $0x30] sm:$0xff]
  %v37 = vld [vmem:[%s1 + $0x38] sm:$0xff]
  %v38 = vld [vmem:[%s1 + $0x40] sm:$0xff]
  %v39 = vld [vmem:[%s1 + $0x48] sm:$0xff]
  %v40 = vld [vmem:[%s1 + $0x50] sm:$0xff]
  %v41 = vld [vmem:[%s1 + $0x58] sm:$0xff]
  %v42 = vld [vmem:[%s1 + $0x60] sm:$0xff]
  %v43 = vld [vmem:[%s1 + $0x68] sm:$0xff]
  %v44 = vld [vmem:[%s1 + $0x70] sm:$0xff]
  %v45 = vld [vmem:[%s1 + $0x78] sm:$0xff]
  %v46 = vld [vmem:[%s1 + $0x80] sm:$0xff]
  %v47 = vld [vmem:[%s1 + $0x88] sm:$0xff]
  %v48 = vld [vmem:[%s1 + $0x90] sm:$0xff]
  %v49 = vld [vmem:[%s1 + $0x98] sm:$0xff]
  %v50 = vld [vmem:[%s1 + $0xa0] sm:$0xff]
  %v51 = vld [vmem:[%s1 + $0xa8] sm:$0xff]
  %v52 = vld [vmem:[%s1 + $0xb0] sm:$0xff]
  %v53 = vld [vmem:[%s1 + $0xb8] sm:$0xff]
  %v54 = vld [vmem:[%s1 + $0xc0] sm:$0xff]
  %v55 = vld [vmem:[%s1 + $0xc8] sm:$0xff]
  %v56 = vld [vmem:[%s1 + $0xd0] sm:$0xff]
  %v57 = vld [vmem:[%s1 + $0xd8] sm:$0xff]
  %v58 = vld [vmem:[%s1 + $0xe0] sm:$0xff]
  %v59 = vld [vmem:[%s1 + $0xe8] sm:$0xff]
  %v60 = vld [vmem:[%s1 + $0xf0] sm:$0xff]
  %v61 = vld [vmem:[%s1 + $0xf8] sm:$0xff]
  %v62 = vld [vmem:[%s1 + $0x100] sm:$0xff]
  %v63 = vld [vmem:[%s1 + $0x108] sm:$0xff]
  %v64 = vld [vmem:[%s1 + $0x110] sm:$0xff]
  %v65 = vld [vmem:[%s1 + $0x118] sm:$0xff]
  %v66 = vld [vmem:[%s1 + $0x120] sm:$0xff]
  %v67 = vld [vmem:[%s1 + $0x128] sm:$0xff]
  %v68 = vld [vmem:[%s1 + $0x130] sm:$0xff]
  %v69 = vld [vmem:[%s1 + $0x138] sm:$0xff]
  %v70 = vld [vmem:[%s1 + $0x140] sm:$0xff]
  %v71 = vld [vmem:[%s1 + $0x148] sm:$0xff]
  %v72 = vld [vmem:[%s1 + $0x150] sm:$0xff]
  %v73 = vld [vmem:[%s1 + $0x158] sm:$0xff]
  %v74 = vld [vmem:[%s1 + $0x160] sm:$0xff]
  %v75 = vld [vmem:[%s1 + $0x168] sm:$0xff]
  %v76 = vld [vmem:[%s1 + $0x170] sm:$0xff]
  %v77 = vld [vmem:[%s1 + $0x178] sm:$0xff]
  %v78 = vld [vmem:[%s1 + $0x180] sm:$0xff]
  %v79 = vld [vmem:[%s1 + $0x188] sm:$0xff]
  %v80 = vld [vmem:[%s1 + $0x190] sm:$0xff]
  %v81 = vld [vmem:[%s1 + $0x198] sm:$0xff]
  %v82 = vld [vmem:[%s1 + $0x1a0] sm:$0xff]
  %v83 = vld [vmem:[%s1 + $0x1a8] sm:$0xff]
  %v84 = vld [vmem:[%s1 + $0x1b0] sm:$0xff]
  %v85 = vld [vmem:[%s1 + $0x1b8] sm:$0xff]
  %v86 = vld [vmem:[%s1 + $0x1c0] sm:$0xff]
  %v87 = vld [vmem:[%s1 + $0x1c8] sm:$0xff]
  %v88 = vld [vmem:[%s1 + $0x1d0] sm:$0xff]
  %v89 = vld [vmem:[%s1 + $0x1d8] sm:$0xff]
  %v90 = vld [vmem:[%s1 + $0x1e0] sm:$0xff]
  %v91 = vld [vmem:[%s1 + $0x1e8] sm:$0xff]
  %v92 = vld [vmem:[%s1 + $0x1f0] sm:$0xff]
  %v93 = vld [vmem:[%s1 + $0x1f8] sm:$0xff]
  %v94 = vld [vmem:[%s2] sm:$0xf]
  %v96 = vlaneseq
  %v97 = vshrl.u32 %v96, 7
  %v98 = vsub.s32 0, %v97
  %v99 = vrot.slane %v94, %v98
  %v100 = vlaneseq
  %v101 = vshrl.u32 %v100, 7
  %v102 = vsub.s32 1, %v101
  %v103 = vrot.slane %v94, %v102
  %v104 = vlaneseq
  %v105 = vshrl.u32 %v104, 7
  %v106 = vsub.s32 2, %v105
  %v107 = vrot.slane %v94, %v106
  %v108 = vlaneseq
  %v109 = vshrl.u32 %v108, 7
  %v110 = vsub.s32 3, %v109
  %v111 = vrot.slane %v94, %v110
  %116 = vmatprep.subr.mxu0 %v31
  %117 = vmatpush1.msra.mxu0 %v30
  %118 = vmatprep.subr.mxu0 %v35
  %119 = vmatpush1.msra.mxu0 %v34
  %120 = vmatprep.subr.mxu0 %v39
  %121 = vmatpush1.msra.mxu0 %v38
  %122 = vmatprep.subr.mxu0 %v43
  %123 = vmatpush1.msra.mxu0 %v42
  %124 = vmatprep.subr.mxu0 %v47
  %125 = vmatpush1.msra.mxu0 %v46
  %126 = vmatprep.subr.mxu0 %v51
  %127 = vmatpush1.msra.mxu0 %v50
  %128 = vmatprep.subr.mxu0 %v55
  %129 = vmatpush1.msra.mxu0 %v54
  %130 = vmatprep.subr.mxu0 %v59
  %131 = vmatpush1.msra.mxu0 %v58
  %132 = vmatprep.subr.mxu0 %v63
  %133 = vmatpush1.msra.mxu0 %v62
  %134 = vmatprep.subr.mxu0 %v67
  %135 = vmatpush1.msra.mxu0 %v66
  %136 = vmatprep.subr.mxu0 %v71
  %137 = vmatpush1.msra.mxu0 %v70
  %138 = vmatprep.subr.mxu0 %v75
  %139 = vmatpush1.msra.mxu0 %v74
  %140 = vmatprep.subr.mxu0 %v79
  %141 = vmatpush1.msra.mxu0 %v78
  %142 = vmatprep.subr.mxu0 %v83
  %143 = vmatpush1.msra.mxu0 %v82
  %144 = vmatprep.subr.mxu0 %v87
  %145 = vmatpush1.msra.mxu0 %v86
  %146 = vmatprep.subr.mxu0 %v91
  %147 = vmatpush1.msra.mxu0 %v90
  %148 = vmatprep.subr.mxu0 0.0
  %149 = vmatpush1.msra.mxu0 0.0
  %150 = vmatprep.subr.mxu0 0.0
  %151 = vmatpush1.msra.mxu0 0.0
  %152 = vmatprep.subr.mxu0 0.0
  %153 = vmatpush1.msra.mxu0 0.0
  %154 = vmatprep.subr.mxu0 0.0
  %155 = vmatpush1.msra.mxu0 0.0
  %156 = vmatprep.subr.mxu0 0.0
  %157 = vmatpush1.msra.mxu0 0.0
  %158 = vmatprep.subr.mxu0 0.0
  %159 = vmatpush1.msra.mxu0 0.0
  %160 = vmatprep.subr.mxu0 0.0
  %161 = vmatpush1.msra.mxu0 0.0
  %162 = vmatprep.subr.mxu0 0.0
  %163 = vmatpush1.msra.mxu0 0.0
  %164 = vmatprep.subr.mxu0 0.0
  %165 = vmatpush1.msra.mxu0 0.0
  %166 = vmatprep.subr.mxu0 0.0
  %167 = vmatpush1.msra.mxu0 0.0
  %168 = vmatprep.subr.mxu0 0.0
  %169 = vmatpush1.msra.mxu0 0.0
  %170 = vmatprep.subr.mxu0 0.0
  %171 = vmatpush1.msra.mxu0 0.0
  %172 = vmatprep.subr.mxu0 0.0
  %173 = vmatpush1.msra.mxu0 0.0
  %174 = vmatprep.subr.mxu0 0.0
  %175 = vmatpush1.msra.mxu0 0.0
  %176 = vmatprep.subr.mxu0 0.0
  %177 = vmatpush1.msra.mxu0 0.0
  %178 = vmatprep.subr.mxu0 0.0
  %179 = vmatpush1.msra.mxu0 0.0
  %180 = vmatprep.mubr.f32.mxu0 0.0
  %181 = vmatmul.mubr.f32.gmra.mrb[0].mxu0 %v26
  %v182 = vpop.f32.mrb[0].mxu0
  %v183 = vadd.f32 %v99, %v182
  %v184 = vpop.f32.mrb[0].mxu0
  %v185 = vadd.f32 %v103, %v184
  %186 = vmatprep.mubr.f32.mxu0 0.0
  %187 = vmatmul.mubr.f32.gmra.mrb[0].mxu0 %v27
  %v188 = vpop.f32.mrb[0].mxu0
  %v189 = vadd.f32 %v99, %v188
  %v190 = vpop.f32.mrb[0].mxu0
  %v191 = vadd.f32 %v103, %v190
  %192 = vmatprep.mubr.f32.mxu0 0.0
  %193 = vmatmul.mubr.f32.gmra.mrb[0].mxu0 %v28
  %v194 = vpop.f32.mrb[0].mxu0
  %v195 = vadd.f32 %v99, %v194
  %v196 = vpop.f32.mrb[0].mxu0
  %v197 = vadd.f32 %v103, %v196
  %198 = vmatprep.mubr.f32.mxu0 0.0
  %199 = vmatmul.mubr.f32.gmra.mrb[0].mxu0 %v29
  %v200 = vpop.f32.mrb[0].mxu0
  %v201 = vadd.f32 %v99, %v200
  %v202 = vpop.f32.mrb[0].mxu0
  %v203 = vadd.f32 %v103, %v202
  %204 = vdwg.mxu0
  %205 = vmatprep.subr.mxu0 %v33
  %206 = vmatpush1.msra.mxu0 %v32
  %207 = vmatprep.subr.mxu0 %v37
  %208 = vmatpush1.msra.mxu0 %v36
  %209 = vmatprep.subr.mxu0 %v41
  %210 = vmatpush1.msra.mxu0 %v40
  %211 = vmatprep.subr.mxu0 %v45
  %212 = vmatpush1.msra.mxu0 %v44
  %213 = vmatprep.subr.mxu0 %v49
  %214 = vmatpush1.msra.mxu0 %v48
  %215 = vmatprep.subr.mxu0 %v53
  %216 = vmatpush1.msra.mxu0 %v52
  %217 = vmatprep.subr.mxu0 %v57
  %218 = vmatpush1.msra.mxu0 %v56
  %219 = vmatprep.subr.mxu0 %v61
  %220 = vmatpush1.msra.mxu0 %v60
  %221 = vmatprep.subr.mxu0 %v65
  %222 = vmatpush1.msra.mxu0 %v64
  %223 = vmatprep.subr.mxu0 %v69
  %224 = vmatpush1.msra.mxu0 %v68
  %225 = vmatprep.subr.mxu0 %v73
  %226 = vmatpush1.msra.mxu0 %v72
  %227 = vmatprep.subr.mxu0 %v77
  %228 = vmatpush1.msra.mxu0 %v76
  %229 = vmatprep.subr.mxu0 %v81
  %230 = vmatpush1.msra.mxu0 %v80
  %231 = vmatprep.subr.mxu0 %v85
  %232 = vmatpush1.msra.mxu0 %v84
  %233 = vmatprep.subr.mxu0 %v89
  %234 = vmatpush1.msra.mxu0 %v88
  %235 = vmatprep.subr.mxu0 %v93
  %236 = vmatpush1.msra.mxu0 %v92
  %237 = vmatprep.subr.mxu0 0.0
  %238 = vmatpush1.msra.mxu0 0.0
  %239 = vmatprep.subr.mxu0 0.0
  %240 = vmatpush1.msra.mxu0 0.0
  %241 = vmatprep.subr.mxu0 0.0
  %242 = vmatpush1.msra.mxu0 0.0
  %243 = vmatprep.subr.mxu0 0.0
  %244 = vmatpush1.msra.mxu0 0.0
  %245 = vmatprep.subr.mxu0 0.0
  %246 = vmatpush1.msra.mxu0 0.0
  %247 = vmatprep.subr.mxu0 0.0
  %248 = vmatpush1.msra.mxu0 0.0
  %249 = vmatprep.subr.mxu0 0.0
  %250 = vmatpush1.msra.mxu0 0.0
  %251 = vmatprep.subr.mxu0 0.0
  %252 = vmatpush1.msra.mxu0 0.0
  %253 = vmatprep.subr.mxu0 0.0
  %254 = vmatpush1.msra.mxu0 0.0
  %255 = vmatprep.subr.mxu0 0.0
  %256 = vmatpush1.msra.mxu0 0.0
  %257 = vmatprep.subr.mxu0 0.0
  %258 = vmatpush1.msra.mxu0 0.0
  %259 = vmatprep.subr.mxu0 0.0
  %260 = vmatpush1.msra.mxu0 0.0
  %261 = vmatprep.subr.mxu0 0.0
  %262 = vmatpush1.msra.mxu0 0.0
  %263 = vmatprep.subr.mxu0 0.0
  %264 = vmatpush1.msra.mxu0 0.0
  %265 = vmatprep.subr.mxu0 0.0
  %266 = vmatpush1.msra.mxu0 0.0
  %267 = vmatprep.subr.mxu0 0.0
  %268 = vmatpush1.msra.mxu0 0.0
  %269 = vmatprep.mubr.f32.mxu0 0.0
  %270 = vmatmul.mubr.f32.gmra.mrb[0].mxu0 %v26
  %v271 = vpop.f32.mrb[0].mxu0
  %v272 = vadd.f32 %v107, %v271
  %v273 = vpop.f32.mrb[0].mxu0
  %v274 = vadd.f32 %v111, %v273
  %275 = vmatprep.mubr.f32.mxu0 0.0
  %276 = vmatmul.mubr.f32.gmra.mrb[0].mxu0 %v27
  %v277 = vpop.f32.mrb[0].mxu0
  %v278 = vadd.f32 %v107, %v277
  %v279 = vpop.f32.mrb[0].mxu0
  %v280 = vadd.f32 %v111, %v279
  %281 = vmatprep.mubr.f32.mxu0 0.0
  %282 = vmatmul.mubr.f32.gmra.mrb[0].mxu0 %v28
  %v283 = vpop.f32.mrb[0].mxu0
  %v284 = vadd.f32 %v107, %v283
  %v285 = vpop.f32.mrb[0].mxu0
  %v286 = vadd.f32 %v111, %v285
  %287 = vmatprep.mubr.f32.mxu0 0.0
  %288 = vmatmul.mubr.f32.gmra.mrb[0].mxu0 %v29
  %v289 = vpop.f32.mrb[0].mxu0
  %v290 = vadd.f32 %v107, %v289
  %v291 = vpop.f32.mrb[0].mxu0
  %v292 = vadd.f32 %v111, %v291
  %293 = vdwg.mxu0
  %v294 = vmax.f32 %v183, 0.0
  %v295 = vmax.f32 %v185, 0.0
  %v296 = vmax.f32 %v272, 0.0
  %v297 = vmax.f32 %v274, 0.0
  %v298 = vmax.f32 %v189, 0.0
  %v299 = vmax.f32 %v191, 0.0
  %v300 = vmax.f32 %v278, 0.0
  %v301 = vmax.f32 %v280, 0.0
  %v302 = vmax.f32 %v195, 0.0
  %v303 = vmax.f32 %v197, 0.0
  %v304 = vmax.f32 %v284, 0.0
  %v305 = vmax.f32 %v286, 0.0
  %v306 = vmax.f32 %v201, 0.0
  %v307 = vmax.f32 %v203, 0.0
  %v308 = vmax.f32 %v290, 0.0
  %v309 = vmax.f32 %v292, 0.0
  %v310 = vld [vmem:[%s3] sm:$0xff]
  %v311 = vld [vmem:[%s3 + $0x8] sm:$0xff]
  %v312 = vld [vmem:[%s3 + $0x10] sm:$0xff]
  %v313 = vld [vmem:[%s3 + $0x18] sm:$0xff]
  %v314 = vld [vmem:[%s3 + $0x20] sm:$0xff]
  %v315 = vld [vmem:[%s3 + $0x28] sm:$0xff]
  %v316 = vld [vmem:[%s3 + $0x30] sm:$0xff]
  %v317 = vld [vmem:[%s3 + $0x38] sm:$0xff]
  %v318 = vld [vmem:[%s3 + $0x40] sm:$0xff]
  %v319 = vld [vmem:[%s3 + $0x48] sm:$0xff]
  %v320 = vld [vmem:[%s3 + $0x50] sm:$0xff]
  %v321 = vld [vmem:[%s3 + $0x58] sm:$0xff]
  %v322 = vld [vmem:[%s3 + $0x60] sm:$0xff]
  %v323 = vld [vmem:[%s3 + $0x68] sm:$0xff]
  %v324 = vld [vmem:[%s3 + $0x70] sm:$0xff]
  %v325 = vld [vmem:[%s3 + $0x78] sm:$0xff]
  %v326 = vld [vmem:[%s3 + $0x80] sm:$0xff]
  %v327 = vld [vmem:[%s3 + $0x88] sm:$0xff]
  %v328 = vld [vmem:[%s3 + $0x90] sm:$0xff]
  %v329 = vld [vmem:[%s3 + $0x98] sm:$0xff]
  %v330 = vld [vmem:[%s3 + $0xa0] sm:$0xff]
  %v331 = vld [vmem:[%s3 + $0xa8] sm:$0xff]
  %v332 = vld [vmem:[%s3 + $0xb0] sm:$0xff]
  %v333 = vld [vmem:[%s3 + $0xb8] sm:$0xff]
  %v334 = vld [vmem:[%s3 + $0xc0] sm:$0xff]
  %v335 = vld [vmem:[%s3 + $0xc8] sm:$0xff]
  %v336 = vld [vmem:[%s3 + $0xd0] sm:$0xff]
  %v337 = vld [vmem:[%s3 + $0xd8] sm:$0xff]
  %v338 = vld [vmem:[%s3 + $0xe0] sm:$0xff]
  %v339 = vld [vmem:[%s3 + $0xe8] sm:$0xff]
  %v340 = vld [vmem:[%s3 + $0xf0] sm:$0xff]
  %v341 = vld [vmem:[%s3 + $0xf8] sm:$0xff]
  %v342 = vld [vmem:[%s3 + $0x100] sm:$0xff]
  %v343 = vld [vmem:[%s3 + $0x108] sm:$0xff]
  %v344 = vld [vmem:[%s3 + $0x110] sm:$0xff]
  %v345 = vld [vmem:[%s3 + $0x118] sm:$0xff]
  %v346 = vld [vmem:[%s3 + $0x120] sm:$0xff]
  %v347 = vld [vmem:[%s3 + $0x128] sm:$0xff]
  %v348 = vld [vmem:[%s3 + $0x130] sm:$0xff]
  %v349 = vld [vmem:[%s3 + $0x138] sm:$0xff]
  %v350 = vld [vmem:[%s3 + $0x140] sm:$0xff]
  %v351 = vld [vmem:[%s3 + $0x148] sm:$0xff]
  %v352 = vld [vmem:[%s3 + $0x150] sm:$0xff]
  %v353 = vld [vmem:[%s3 + $0x158] sm:$0xff]
  %v354 = vld [vmem:[%s3 + $0x160] sm:$0xff]
  %v355 = vld [vmem:[%s3 + $0x168] sm:$0xff]
  %v356 = vld [vmem:[%s3 + $0x170] sm:$0xff]
  %v357 = vld [vmem:[%s3 + $0x178] sm:$0xff]
  %v358 = vld [vmem:[%s3 + $0x180] sm:$0xff]
  %v359 = vld [vmem:[%s3 + $0x188] sm:$0xff]
  %v360 = vld [vmem:[%s3 + $0x190] sm:$0xff]
  %v361 = vld [vmem:[%s3 + $0x198] sm:$0xff]
  %v362 = vld [vmem:[%s3 + $0x1a0] sm:$0xff]
  %v363 = vld [vmem:[%s3 + $0x1a8] sm:$0xff]
  %v364 = vld [vmem:[%s3 + $0x1b0] sm:$0xff]
  %v365 = vld [vmem:[%s3 + $0x1b8] sm:$0xff]
  %v366 = vld [vmem:[%s3 + $0x1c0] sm:$0xff]
  %v367 = vld [vmem:[%s3 + $0x1c8] sm:$0xff]
  %v368 = vld [vmem:[%s3 + $0x1d0] sm:$0xff]
  %v369 = vld [vmem:[%s3 + $0x1d8] sm:$0xff]
  %v370 = vld [vmem:[%s3 + $0x1e0] sm:$0xff]
  %v371 = vld [vmem:[%s3 + $0x1e8] sm:$0xff]
  %v372 = vld [vmem:[%s3 + $0x1f0] sm:$0xff]
  %v373 = vld [vmem:[%s3 + $0x1f8] sm:$0xff]
  %v374 = vld [vmem:[%s3 + $0x200] sm:$0xff]
  %v375 = vld [vmem:[%s3 + $0x208] sm:$0xff]
  %v376 = vld [vmem:[%s3 + $0x210] sm:$0xff]
  %v377 = vld [vmem:[%s3 + $0x218] sm:$0xff]
  %v378 = vld [vmem:[%s3 + $0x220] sm:$0xff]
  %v379 = vld [vmem:[%s3 + $0x228] sm:$0xff]
  %v380 = vld [vmem:[%s3 + $0x230] sm:$0xff]
  %v381 = vld [vmem:[%s3 + $0x238] sm:$0xff]
  %v382 = vld [vmem:[%s3 + $0x240] sm:$0xff]
  %v383 = vld [vmem:[%s3 + $0x248] sm:$0xff]
  %v384 = vld [vmem:[%s3 + $0x250] sm:$0xff]
  %v385 = vld [vmem:[%s3 + $0x258] sm:$0xff]
  %v386 = vld [vmem:[%s3 + $0x260] sm:$0xff]
  %v387 = vld [vmem:[%s3 + $0x268] sm:$0xff]
  %v388 = vld [vmem:[%s3 + $0x270] sm:$0xff]
  %v389 = vld [vmem:[%s3 + $0x278] sm:$0xff]
  %v390 = vld [vmem:[%s3 + $0x280] sm:$0xff]
  %v391 = vld [vmem:[%s3 + $0x288] sm:$0xff]
  %v392 = vld [vmem:[%s3 + $0x290] sm:$0xff]
  %v393 = vld [vmem:[%s3 + $0x298] sm:$0xff]
  %v394 = vld [vmem:[%s3 + $0x2a0] sm:$0xff]
  %v395 = vld [vmem:[%s3 + $0x2a8] sm:$0xff]
  %v396 = vld [vmem:[%s3 + $0x2b0] sm:$0xff]
  %v397 = vld [vmem:[%s3 + $0x2b8] sm:$0xff]
  %v398 = vld [vmem:[%s3 + $0x2c0] sm:$0xff]
  %v399 = vld [vmem:[%s3 + $0x2c8] sm:$0xff]
  %v400 = vld [vmem:[%s3 + $0x2d0] sm:$0xff]
  %v401 = vld [vmem:[%s3 + $0x2d8] sm:$0xff]
  %v402 = vld [vmem:[%s3 + $0x2e0] sm:$0xff]
  %v403 = vld [vmem:[%s3 + $0x2e8] sm:$0xff]
  %v404 = vld [vmem:[%s3 + $0x2f0] sm:$0xff]
  %v405 = vld [vmem:[%s3 + $0x2f8] sm:$0xff]
  %v406 = vld [vmem:[%s3 + $0x300] sm:$0xff]
  %v407 = vld [vmem:[%s3 + $0x308] sm:$0xff]
  %v408 = vld [vmem:[%s3 + $0x310] sm:$0xff]
  %v409 = vld [vmem:[%s3 + $0x318] sm:$0xff]
  %v410 = vld [vmem:[%s3 + $0x320] sm:$0xff]
  %v411 = vld [vmem:[%s3 + $0x328] sm:$0xff]
  %v412 = vld [vmem:[%s3 + $0x330] sm:$0xff]
  %v413 = vld [vmem:[%s3 + $0x338] sm:$0xff]
  %v414 = vld [vmem:[%s3 + $0x340] sm:$0xff]
  %v415 = vld [vmem:[%s3 + $0x348] sm:$0xff]
  %v416 = vld [vmem:[%s3 + $0x350] sm:$0xff]
  %v417 = vld [vmem:[%s3 + $0x358] sm:$0xff]
  %v418 = vld [vmem:[%s3 + $0x360] sm:$0xff]
  %v419 = vld [vmem:[%s3 + $0x368] sm:$0xff]
  %v420 = vld [vmem:[%s3 + $0x370] sm:$0xff]
  %v421 = vld [vmem:[%s3 + $0x378] sm:$0xff]
  %v422 = vld [vmem:[%s3 + $0x380] sm:$0xff]
  %v423 = vld [vmem:[%s3 + $0x388] sm:$0xff]
  %v424 = vld [vmem:[%s3 + $0x390] sm:$0xff]
  %v425 = vld [vmem:[%s3 + $0x398] sm:$0xff]
  %v426 = vld [vmem:[%s3 + $0x3a0] sm:$0xff]
  %v427 = vld [vmem:[%s3 + $0x3a8] sm:$0xff]
  %v428 = vld [vmem:[%s3 + $0x3b0] sm:$0xff]
  %v429 = vld [vmem:[%s3 + $0x3b8] sm:$0xff]
  %v430 = vld [vmem:[%s3 + $0x3c0] sm:$0xff]
  %v431 = vld [vmem:[%s3 + $0x3c8] sm:$0xff]
  %v432 = vld [vmem:[%s3 + $0x3d0] sm:$0xff]
  %v433 = vld [vmem:[%s3 + $0x3d8] sm:$0xff]
  %v434 = vld [vmem:[%s3 + $0x3e0] sm:$0xff]
  %v435 = vld [vmem:[%s3 + $0x3e8] sm:$0xff]
  %v436 = vld [vmem:[%s3 + $0x3f0] sm:$0xff]
  %v437 = vld [vmem:[%s3 + $0x3f8] sm:$0xff]
  %v438 = vld [vmem:[%s4] sm:$0x3]
  %v440 = vlaneseq
  %v441 = vshrl.u32 %v440, 7
  %v442 = vsub.s32 0, %v441
  %v443 = vrot.slane %v438, %v442
  %v444 = vlaneseq
  %v445 = vshrl.u32 %v444, 7
  %v446 = vsub.s32 1, %v445
  %v447 = vrot.slane %v438, %v446
  %450 = vmatprep.subr.mxu0 %v311
  %451 = vmatpush1.msra.mxu0 %v310
  %452 = vmatprep.subr.mxu0 %v313
  %453 = vmatpush1.msra.mxu0 %v312
  %454 = vmatprep.subr.mxu0 %v315
  %455 = vmatpush1.msra.mxu0 %v314
  %456 = vmatprep.subr.mxu0 %v317
  %457 = vmatpush1.msra.mxu0 %v316
  %458 = vmatprep.subr.mxu0 %v319
  %459 = vmatpush1.msra.mxu0 %v318
  %460 = vmatprep.subr.mxu0 %v321
  %461 = vmatpush1.msra.mxu0 %v320
  %462 = vmatprep.subr.mxu0 %v323
  %463 = vmatpush1.msra.mxu0 %v322
  %464 = vmatprep.subr.mxu0 %v325
  %465 = vmatpush1.msra.mxu0 %v324
  %466 = vmatprep.subr.mxu0 %v327
  %467 = vmatpush1.msra.mxu0 %v326
  %468 = vmatprep.subr.mxu0 %v329
  %469 = vmatpush1.msra.mxu0 %v328
  %470 = vmatprep.subr.mxu0 %v331
  %471 = vmatpush1.msra.mxu0 %v330
  %472 = vmatprep.subr.mxu0 %v333
  %473 = vmatpush1.msra.mxu0 %v332
  %474 = vmatprep.subr.mxu0 %v335
  %475 = vmatpush1.msra.mxu0 %v334
  %476 = vmatprep.subr.mxu0 %v337
  %477 = vmatpush1.msra.mxu0 %v336
  %478 = vmatprep.subr.mxu0 %v339
  %479 = vmatpush1.msra.mxu0 %v338
  %480 = vmatprep.subr.mxu0 %v341
  %481 = vmatpush1.msra.mxu0 %v340
  %482 = vmatprep.subr.mxu0 %v343
  %483 = vmatpush1.msra.mxu0 %v342
  %484 = vmatprep.subr.mxu0 %v345
  %485 = vmatpush1.msra.mxu0 %v344
  %486 = vmatprep.subr.mxu0 %v347
  %487 = vmatpush1.msra.mxu0 %v346
  %488 = vmatprep.subr.mxu0 %v349
  %489 = vmatpush1.msra.mxu0 %v348
  %490 = vmatprep.subr.mxu0 %v351
  %491 = vmatpush1.msra.mxu0 %v350
  %492 = vmatprep.subr.mxu0 %v353
  %493 = vmatpush1.msra.mxu0 %v352
  %494 = vmatprep.subr.mxu0 %v355
  %495 = vmatpush1.msra.mxu0 %v354
  %496 = vmatprep.subr.mxu0 %v357
  %497 = vmatpush1.msra.mxu0 %v356
  %498 = vmatprep.subr.mxu0 %v359
  %499 = vmatpush1.msra.mxu0 %v358
  %500 = vmatprep.subr.mxu0 %v361
  %501 = vmatpush1.msra.mxu0 %v360
  %502 = vmatprep.subr.mxu0 %v363
  %503 = vmatpush1.msra.mxu0 %v362
  %504 = vmatprep.subr.mxu0 %v365
  %505 = vmatpush1.msra.mxu0 %v364
  %506 = vmatprep.subr.mxu0 %v367
  %507 = vmatpush1.msra.mxu0 %v366
  %508 = vmatprep.subr.mxu0 %v369
  %509 = vmatpush1.msra.mxu0 %v368
  %510 = vmatprep.subr.mxu0 %v371
  %511 = vmatpush1.msra.mxu0 %v370
  %512 = vmatprep.subr.mxu0 %v373
  %513 = vmatpush1.msra.mxu0 %v372
  %514 = vmatprep.mubr.f32.mxu0 %v295
  %515 = vmatmul.mubr.f32.gmra.mrb[0].mxu0 %v294
  %v516 = vpop.f32.mrb[0].mxu0
  %v517 = vadd.f32 %v443, %v516
  %v518 = vpop.f32.mrb[0].mxu0
  %v519 = vadd.f32 %v447, %v518
  %520 = vmatprep.mubr.f32.mxu0 %v299
  %521 = vmatmul.mubr.f32.gmra.mrb[0].mxu0 %v298
  %v522 = vpop.f32.mrb[0].mxu0
  %v523 = vadd.f32 %v443, %v522
  %v524 = vpop.f32.mrb[0].mxu0
  %v525 = vadd.f32 %v447, %v524
  %526 = vmatprep.mubr.f32.mxu0 %v303
  %527 = vmatmul.mubr.f32.gmra.mrb[0].mxu0 %v302
  %v528 = vpop.f32.mrb[0].mxu0
  %v529 = vadd.f32 %v443, %v528
  %v530 = vpop.f32.mrb[0].mxu0
  %v531 = vadd.f32 %v447, %v530
  %532 = vmatprep.mubr.f32.mxu0 %v307
  %533 = vmatmul.mubr.f32.gmra.mrb[0].mxu0 %v306
  %v534 = vpop.f32.mrb[0].mxu0
  %v535 = vadd.f32 %v443, %v534
  %v536 = vpop.f32.mrb[0].mxu0
  %v537 = vadd.f32 %v447, %v536
  %538 = vdwg.mxu0
  %539 = vmatprep.subr.mxu0 %v375
  %540 = vmatpush1.msra.mxu0 %v374
  %541 = vmatprep.subr.mxu0 %v377
  %542 = vmatpush1.msra.mxu0 %v376
  %543 = vmatprep.subr.mxu0 %v379
  %544 = vmatpush1.msra.mxu0 %v378
  %545 = vmatprep.subr.mxu0 %v381
  %546 = vmatpush1.msra.mxu0 %v380
  %547 = vmatprep.subr.mxu0 %v383
  %548 = vmatpush1.msra.mxu0 %v382
  %549 = vmatprep.subr.mxu0 %v385
  %550 = vmatpush1.msra.mxu0 %v384
  %551 = vmatprep.subr.mxu0 %v387
  %552 = vmatpush1.msra.mxu0 %v386
  %553 = vmatprep.subr.mxu0 %v389
  %554 = vmatpush1.msra.mxu0 %v388
  %555 = vmatprep.subr.mxu0 %v391
  %556 = vmatpush1.msra.mxu0 %v390
  %557 = vmatprep.subr.mxu0 %v393
  %558 = vmatpush1.msra.mxu0 %v392
  %559 = vmatprep.subr.mxu0 %v395
  %560 = vmatpush1.msra.mxu0 %v394
  %561 = vmatprep.subr.mxu0 %v397
  %562 = vmatpush1.msra.mxu0 %v396
  %563 = vmatprep.subr.mxu0 %v399
  %564 = vmatpush1.msra.mxu0 %v398
  %565 = vmatprep.subr.mxu0 %v401
  %566 = vmatpush1.msra.mxu0 %v400
  %567 = vmatprep.subr.mxu0 %v403
  %568 = vmatpush1.msra.mxu0 %v402
  %569 = vmatprep.subr.mxu0 %v405
  %570 = vmatpush1.msra.mxu0 %v404
  %571 = vmatprep.subr.mxu0 %v407
  %572 = vmatpush1.msra.mxu0 %v406
  %573 = vmatprep.subr.mxu0 %v409
  %574 = vmatpush1.msra.mxu0 %v408
  %575 = vmatprep.subr.mxu0 %v411
  %576 = vmatpush1.msra.mxu0 %v410
  %577 = vmatprep.subr.mxu0 %v413
  %578 = vmatpush1.msra.mxu0 %v412
  %579 = vmatprep.subr.mxu0 %v415
  %580 = vmatpush1.msra.mxu0 %v414
  %581 = vmatprep.subr.mxu0 %v417
  %582 = vmatpush1.msra.mxu0 %v416
  %583 = vmatprep.subr.mxu0 %v419
  %584 = vmatpush1.msra.mxu0 %v418
  %585 = vmatprep.subr.mxu0 %v421
  %586 = vmatpush1.msra.mxu0 %v420
  %587 = vmatprep.subr.mxu0 %v423
  %588 = vmatpush1.msra.mxu0 %v422
  %589 = vmatprep.subr.mxu0 %v425
  %590 = vmatpush1.msra.mxu0 %v424
  %591 = vmatprep.subr.mxu0 %v427
  %592 = vmatpush1.msra.mxu0 %v426
  %593 = vmatprep.subr.mxu0 %v429
  %594 = vmatpush1.msra.mxu0 %v428
  %595 = vmatprep.subr.mxu0 %v431
  %596 = vmatpush1.msra.mxu0 %v430
  %597 = vmatprep.subr.mxu0 %v433
  %598 = vmatpush1.msra.mxu0 %v432
  %599 = vmatprep.subr.mxu0 %v435
  %600 = vmatpush1.msra.mxu0 %v434
  %601 = vmatprep.subr.mxu0 %v437
  %602 = vmatpush1.msra.mxu0 %v436
  %603 = vmatprep.mubr.f32.mxu0 %v297
  %604 = vmatmul.mubr.f32.gmra.mrb[0].mxu0 %v296
  %v605 = vpop.f32.mrb[0].mxu0
  %v606 = vadd.f32 %v517, %v605
  %v607 = vpop.f32.mrb[0].mxu0
  %v608 = vadd.f32 %v519, %v607
  %609 = vmatprep.mubr.f32.mxu0 %v301
  %610 = vmatmul.mubr.f32.gmra.mrb[0].mxu0 %v300
  %v611 = vpop.f32.mrb[0].mxu0
  %v612 = vadd.f32 %v523, %v611
  %v613 = vpop.f32.mrb[0].mxu0
  %v614 = vadd.f32 %v525, %v613
  %615 = vmatprep.mubr.f32.mxu0 %v305
  %616 = vmatmul.mubr.f32.gmra.mrb[0].mxu0 %v304
  %v617 = vpop.f32.mrb[0].mxu0
  %v618 = vadd.f32 %v529, %v617
  %v619 = vpop.f32.mrb[0].mxu0
  %v620 = vadd.f32 %v531, %v619
  %621 = vmatprep.mubr.f32.mxu0 %v309
  %622 = vmatmul.mubr.f32.gmra.mrb[0].mxu0 %v308
  %v623 = vpop.f32.mrb[0].mxu0
  %v624 = vadd.f32 %v535, %v623
  %v625 = vpop.f32.mrb[0].mxu0
  %v626 = vadd.f32 %v537, %v625
  %627 = vdwg.mxu0
  %v628 = vmax.f32 %v606, 0.0
  %v629 = vmax.f32 %v608, 0.0
  %v630 = vmax.f32 %v612, 0.0
  %v631 = vmax.f32 %v614, 0.0
  %v632 = vmax.f32 %v618, 0.0
  %v633 = vmax.f32 %v620, 0.0
  %v634 = vmax.f32 %v624, 0.0
  %v635 = vmax.f32 %v626, 0.0
  %v636 = vld [vmem:[%s5] sm:$0xff]
  %v637 = vld [vmem:[%s5 + $0x8] sm:$0xff]
  %v638 = vld [vmem:[%s5 + $0x10] sm:$0xff]
  %v639 = vld [vmem:[%s5 + $0x18] sm:$0xff]
  %v640 = vld [vmem:[%s5 + $0x20] sm:$0xff]
  %v641 = vld [vmem:[%s5 + $0x28] sm:$0xff]
  %v642 = vld [vmem:[%s5 + $0x30] sm:$0xff]
  %v643 = vld [vmem:[%s5 + $0x38] sm:$0xff]
  %v644 = vld [vmem:[%s5 + $0x40] sm:$0xff]
  %v645 = vld [vmem:[%s5 + $0x48] sm:$0xff]
  %v646 = vld [vmem:[%s5 + $0x50] sm:$0xff]
  %v647 = vld [vmem:[%s5 + $0x58] sm:$0xff]
  %v648 = vld [vmem:[%s5 + $0x60] sm:$0xff]
  %v649 = vld [vmem:[%s5 + $0x68] sm:$0xff]
  %v650 = vld [vmem:[%s5 + $0x70] sm:$0xff]
  %v651 = vld [vmem:[%s5 + $0x78] sm:$0xff]
  %v652 = vld [vmem:[%s5 + $0x80] sm:$0xff]
  %v653 = vld [vmem:[%s5 + $0x88] sm:$0xff]
  %v654 = vld [vmem:[%s5 + $0x90] sm:$0xff]
  %v655 = vld [vmem:[%s5 + $0x98] sm:$0xff]
  %v656 = vld [vmem:[%s5 + $0xa0] sm:$0xff]
  %v657 = vld [vmem:[%s5 + $0xa8] sm:$0xff]
  %v658 = vld [vmem:[%s5 + $0xb0] sm:$0xff]
  %v659 = vld [vmem:[%s5 + $0xb8] sm:$0xff]
  %v660 = vld [vmem:[%s5 + $0xc0] sm:$0xff]
  %v661 = vld [vmem:[%s5 + $0xc8] sm:$0xff]
  %v662 = vld [vmem:[%s5 + $0xd0] sm:$0xff]
  %v663 = vld [vmem:[%s5 + $0xd8] sm:$0xff]
  %v664 = vld [vmem:[%s5 + $0xe0] sm:$0xff]
  %v665 = vld [vmem:[%s5 + $0xe8] sm:$0xff]
  %v666 = vld [vmem:[%s5 + $0xf0] sm:$0xff]
  %v667 = vld [vmem:[%s5 + $0xf8] sm:$0xff]
  %v668 = vld [vmem:[%s6] sm:$0x1]
  %v670 = vlaneseq
  %v671 = vshrl.u32 %v670, 7
  %v672 = vsub.s32 0, %v671
  %v673 = vrot.slane %v668, %v672
  %675 = vmatprep.subr.mxu0 0.0
  %676 = vmatpush1.msra.mxu0 %v636
  %677 = vmatprep.subr.mxu0 0.0
  %678 = vmatpush1.msra.mxu0 %v637
  %679 = vmatprep.subr.mxu0 0.0
  %680 = vmatpush1.msra.mxu0 %v638
  %681 = vmatprep.subr.mxu0 0.0
  %682 = vmatpush1.msra.mxu0 %v639
  %683 = vmatprep.subr.mxu0 0.0
  %684 = vmatpush1.msra.mxu0 %v640
  %685 = vmatprep.subr.mxu0 0.0
  %686 = vmatpush1.msra.mxu0 %v641
  %687 = vmatprep.subr.mxu0 0.0
  %688 = vmatpush1.msra.mxu0 %v642
  %689 = vmatprep.subr.mxu0 0.0
  %690 = vmatpush1.msra.mxu0 %v643
  %691 = vmatprep.subr.mxu0 0.0
  %692 = vmatpush1.msra.mxu0 %v644
  %693 = vmatprep.subr.mxu0 0.0
  %694 = vmatpush1.msra.mxu0 %v645
  %695 = vmatprep.subr.mxu0 0.0
  %696 = vmatpush1.msra.mxu0 %v646
  %697 = vmatprep.subr.mxu0 0.0
  %698 = vmatpush1.msra.mxu0 %v647
  %699 = vmatprep.subr.mxu0 0.0
  %700 = vmatpush1.msra.mxu0 %v648
  %701 = vmatprep.subr.mxu0 0.0
  %702 = vmatpush1.msra.mxu0 %v649
  %703 = vmatprep.subr.mxu0 0.0
  %704 = vmatpush1.msra.mxu0 %v650
  %705 = vmatprep.subr.mxu0 0.0
  %706 = vmatpush1.msra.mxu0 %v651
  %707 = vmatprep.subr.mxu0 0.0
  %708 = vmatpush1.msra.mxu0 %v652
  %709 = vmatprep.subr.mxu0 0.0
  %710 = vmatpush1.msra.mxu0 %v653
  %711 = vmatprep.subr.mxu0 0.0
  %712 = vmatpush1.msra.mxu0 %v654
  %713 = vmatprep.subr.mxu0 0.0
  %714 = vmatpush1.msra.mxu0 %v655
  %715 = vmatprep.subr.mxu0 0.0
  %716 = vmatpush1.msra.mxu0 %v656
  %717 = vmatprep.subr.mxu0 0.0
  %718 = vmatpush1.msra.mxu0 %v657
  %719 = vmatprep.subr.mxu0 0.0
  %720 = vmatpush1.msra.mxu0 %v658
  %721 = vmatprep.subr.mxu0 0.0
  %722 = vmatpush1.msra.mxu0 %v659
  %723 = vmatprep.subr.mxu0 0.0
  %724 = vmatpush1.msra.mxu0 %v660
  %725 = vmatprep.subr.mxu0 0.0
  %726 = vmatpush1.msra.mxu0 %v661
  %727 = vmatprep.subr.mxu0 0.0
  %728 = vmatpush1.msra.mxu0 %v662
  %729 = vmatprep.subr.mxu0 0.0
  %730 = vmatpush1.msra.mxu0 %v663
  %731 = vmatprep.subr.mxu0 0.0
  %732 = vmatpush1.msra.mxu0 %v664
  %733 = vmatprep.subr.mxu0 0.0
  %734 = vmatpush1.msra.mxu0 %v665
  %735 = vmatprep.subr.mxu0 0.0
  %736 = vmatpush1.msra.mxu0 %v666
  %737 = vmatprep.subr.mxu0 0.0
  %738 = vmatpush1.msra.mxu0 %v667
  %739 = vmatprep.mubr.f32.mxu0 %v629
  %740 = vmatmul.mubr.f32.gmra.mrb[0].mxu0 %v628
  %v741 = vpop.f32.mrb[0].mxu0
  %v742 = vadd.f32 %v673, %v741
  %v743 = vpop.f32.mrb[0].mxu0
  %744 = vmatprep.mubr.f32.mxu0 %v631
  %745 = vmatmul.mubr.f32.gmra.mrb[0].mxu0 %v630
  %v746 = vpop.f32.mrb[0].mxu0
  %v747 = vadd.f32 %v673, %v746
  %v748 = vpop.f32.mrb[0].mxu0
  %749 = vmatprep.mubr.f32.mxu0 %v633
  %750 = vmatmul.mubr.f32.gmra.mrb[0].mxu0 %v632
  %v751 = vpop.f32.mrb[0].mxu0
  %v752 = vadd.f32 %v673, %v751
  %v753 = vpop.f32.mrb[0].mxu0
  %754 = vmatprep.mubr.f32.mxu0 %v635
  %755 = vmatmul.mubr.f32.gmra.mrb[0].mxu0 %v634
  %v756 = vpop.f32.mrb[0].mxu0
  %v757 = vadd.f32 %v673, %v756
  %v758 = vpop.f32.mrb[0].mxu0
  %759 = vdwg.mxu0
  %760 = vst [vmem:[%s7] sm:$0xff] %v742
  %761 = vst [vmem:[%s7 + $0x8] sm:$0xff] %v747
  %762 = vst [vmem:[%s7 + $0x10] sm:$0xff] %v752
  %763 = vst [vmem:[%s7 + $0x18] sm:$0x1] %v757
  // Predicated region
  $region30: #{offset_predictor_forward.1} parent=0 // pred_check
    _
  $region31: #{offset_predictor_forward.1} parent=0 // pred_check_branch
    %765 = sbr.rel (0) target = $region33
  $region32: #{offset_predictor_forward.1} parent=0 // pred_region
    _
  $region33: #{offset_predictor_forward.1} parent=0 // pred_fallthru
    _
  // Predicated region
  $region34: #{offset_predictor_forward.1} parent=0 // pred_check
    _
  $region35: #{offset_predictor_forward.1} parent=0 // pred_check_branch
    %767 = sbr.rel (0) target = $region37
  $region36: #{offset_predictor_forward.1} parent=0 // pred_region
    _
  $region37: #{offset_predictor_forward.1} parent=0 // pred_fallthru
    _

</llo_original>
